<compile_context>
chip_gen: v7x
topology: tpu7x:2x2x1
jax: 0.10.0
libtpu: 0.0.40
codegen_flags: <defaults>
</compile_context>

<pallas_src>
import functools

import jax
import jax.numpy as jnp
from jax.experimental import pallas as pl
from jax.experimental.pallas import tpu as pltpu

GAMMA_NEG = 4
GAMMA_POS = 1
CLIP = 0.05
EPS = 1e-8


def _round_up(n, m):
    return ((n + m - 1) // m) * m


def _static_int_pow(base, n):
    """base**n for a static non-negative integer n via repeated squaring (VPU only)."""
    if n == 0:
        return jnp.ones_like(base)
    result = None
    cur = base
    k = n
    while k > 0:
        if k & 1:
            result = cur if result is None else result * cur
        k >>= 1
        if k:
            cur = cur * cur
    return result


def _pow_static(base, g):
    """base**g; integer-power rewrite when g is a static non-negative integer."""
    if float(g) == int(g) and int(g) >= 0:
        return _static_int_pow(base, int(g))
    return jnp.power(base, jnp.float32(g))


def _asl_kernel(x_ref, y_ref, out_ref, *, gamma_neg, gamma_pos, clip, eps,
                total_rows, block_rows):
    x = x_ref[...].astype(jnp.float32)
    y = y_ref[...].astype(jnp.float32)
    y_is_pos = y > 0.5  # targets are a multi-label *binarized* vector ({0,1})

    xs_pos = jax.nn.sigmoid(x)
    xs_neg = 1.0 - xs_pos
    if clip is not None and clip > 0:
        xs_neg = jnp.minimum(xs_neg + clip, 1.0)

    # With binary y:  y*log(xs_pos) + (1-y)*log(xs_neg) == log(selected prob),
    # and the selected prob is exactly pt = xs_pos*y + xs_neg*(1-y).
    prob = jnp.where(y_is_pos, xs_pos, xs_neg)
    loss = jnp.log(jnp.maximum(prob, eps))

    if gamma_neg > 0 or gamma_pos > 0:
        one_minus_pt = 1.0 - prob
        w = jnp.where(y_is_pos,
                      _pow_static(one_minus_pt, gamma_pos),
                      _pow_static(one_minus_pt, gamma_neg))
        loss = loss * w

    # Mask rows past the end of the batch (only needed when B % block_rows != 0).
    if total_rows % block_rows != 0:
        i = pl.program_id(0)
        row = jax.lax.broadcasted_iota(jnp.int32, loss.shape, 0) + i * block_rows
        loss = jnp.where(row < total_rows, loss, 0.0)

    # Per-block partial sum (no cross-step dependency -> grid axis can be parallel).
    out_ref[0, 0] = -jnp.sum(loss)


def asymmetric_loss_sigmoid(x, y, *, gamma_neg=GAMMA_NEG, gamma_pos=GAMMA_POS,
                            clip=CLIP, eps=EPS, max_block_rows=1024,
                            vmem_target_bytes=4 * 1024 * 1024):
    """x: [B, C] logits, y: [B, C] binarized multi-label targets. Returns scalar."""
    B, C = x.shape

    # Pick the largest row-block that (a) covers B when the problem is small and
    # (b) keeps a single f32 input tile <= ~vmem_target_bytes so that
    # 2 inputs x 2 pipeline buffers stay well inside v7x's smaller VMEM.
    rows_for_target = max(8, (vmem_target_bytes // (4 * C)) // 8 * 8)
    block_rows = min(max_block_rows, rows_for_target, _round_up(B, 8))
    num_blocks = pl.cdiv(B, block_rows)

    kernel = functools.partial(
        _asl_kernel, gamma_neg=gamma_neg, gamma_pos=gamma_pos, clip=clip,
        eps=eps, total_rows=B, block_rows=block_rows,
    )

    partials = pl.pallas_call(
        kernel,
        out_shape=jax.ShapeDtypeStruct((num_blocks, 1), jnp.float32),
        grid_spec=pl.GridSpec(
            grid=(num_blocks,),
            in_specs=[
                pl.BlockSpec((block_rows, C), lambda i: (i, 0)),
                pl.BlockSpec((block_rows, C), lambda i: (i, 0)),
            ],
            out_specs=pl.BlockSpec((1, 1), lambda i: (i, 0),
                                   memory_space=pltpu.SMEM),
        ),
        compiler_params=pltpu.CompilerParams(
            dimension_semantics=("parallel",),  # independent blocks -> megacore OK
        ),
    )(x, y)
    return jnp.sum(partials)


def _reference(x, y, gamma_neg=GAMMA_NEG, gamma_pos=GAMMA_POS, clip=CLIP, eps=EPS):
    """Direct transcription of the PyTorch module's forward (fp32)."""
    x = x.astype(jnp.float32)
    y = y.astype(jnp.float32)
    xs_pos = jax.nn.sigmoid(x)
    xs_neg = 1.0 - xs_pos
    xs_neg = jnp.minimum(xs_neg + clip, 1.0)
    los_pos = y * jnp.log(jnp.maximum(xs_pos, eps))
    los_neg = (1.0 - y) * jnp.log(jnp.maximum(xs_neg, eps))
    loss = los_pos + los_neg
    pt = xs_pos * y + xs_neg * (1.0 - y)
    one_sided_gamma = gamma_pos * y + gamma_neg * (1.0 - y)
    loss = loss * jnp.power(1.0 - pt, one_sided_gamma)
    return -jnp.sum(loss)


if __name__ == "__main__":
    # Small multi-label classification shapes: batch=16, num_classes=128.
    B, C = 16, 128
    key = jax.random.PRNGKey(0)
    kx, ky = jax.random.split(key)
    x = jax.random.normal(kx, (B, C), dtype=jnp.float32)
    y = (jax.random.uniform(ky, (B, C)) < 0.2).astype(jnp.float32)

    loss = asymmetric_loss_sigmoid(x, y)
    loss = jax.block_until_ready(loss)

    ref = _reference(x, y)
    assert jnp.allclose(loss, ref, rtol=1e-4, atol=1e-3), (loss, ref)

    print("KERNEL_OK")
</pallas_src>

<mosaic_0001>
module attributes {stable_mosaic.version = 11 : i64} {
  func.func @_asl_kernel(%arg0: i32, %arg1: memref<16x128xf32, #tpu.memory_space<vmem>>, %arg2: memref<16x128xf32, #tpu.memory_space<vmem>>, %arg3: memref<1x1xf32, #tpu.memory_space<smem>>) attributes {dimension_semantics = [#tpu.dimension_semantics<parallel>], iteration_bounds = array<i64: 1>, scalar_prefetch = 0 : i64, scratch_operands = 0 : i64, tpu.core_type = #tpu.core_type<tc>, window_params = [{transform_indices = @transform_0, window_bounds = array<i64: 16, 128>}, {transform_indices = @transform_1, window_bounds = array<i64: 16, 128>}, {transform_indices = @transform_2, window_bounds = array<i64: 1, 1>}]} {
    %c0 = arith.constant 0 : index
    %c0_0 = arith.constant 0 : index
    %0 = vector.load %arg1[%c0, %c0_0] : memref<16x128xf32, #tpu.memory_space<vmem>>, vector<16x128xf32>
    %c0_1 = arith.constant 0 : index
    %c0_2 = arith.constant 0 : index
    %1 = vector.load %arg2[%c0_1, %c0_2] : memref<16x128xf32, #tpu.memory_space<vmem>>, vector<16x128xf32>
    %cst = arith.constant 5.000000e-01 : f32
    %2 = vector.broadcast %cst : f32 to vector<16x128xf32>
    %3 = arith.cmpf ogt, %1, %2 : vector<16x128xf32>
    %4 = arith.negf %0 : vector<16x128xf32>
    %5 = math.exp %4 : vector<16x128xf32>
    %cst_3 = arith.constant 1.000000e+00 : f32
    %6 = vector.broadcast %cst_3 : f32 to vector<16x128xf32>
    %7 = arith.addf %6, %5 : vector<16x128xf32>
    %8 = arith.divf %6, %7 : vector<16x128xf32>
    %cst_4 = arith.constant 1.000000e+00 : f32
    %9 = vector.broadcast %cst_4 : f32 to vector<16x128xf32>
    %10 = arith.subf %9, %8 : vector<16x128xf32>
    %cst_5 = arith.constant 5.000000e-02 : f32
    %11 = vector.broadcast %cst_5 : f32 to vector<16x128xf32>
    %12 = arith.addf %10, %11 : vector<16x128xf32>
    %cst_6 = arith.constant 1.000000e+00 : f32
    %13 = vector.broadcast %cst_6 : f32 to vector<16x128xf32>
    %14 = arith.minimumf %12, %13 : vector<16x128xf32>
    %15 = arith.select %3, %8, %14 : vector<16x128xi1>, vector<16x128xf32>
    %cst_7 = arith.constant 9.99999993E-9 : f32
    %16 = vector.broadcast %cst_7 : f32 to vector<16x128xf32>
    %17 = arith.maximumf %15, %16 : vector<16x128xf32>
    %18 = math.log %17 : vector<16x128xf32>
    %cst_8 = arith.constant 1.000000e+00 : f32
    %19 = vector.broadcast %cst_8 : f32 to vector<16x128xf32>
    %20 = arith.subf %19, %15 : vector<16x128xf32>
    %21 = arith.mulf %20, %20 : vector<16x128xf32>
    %22 = arith.mulf %21, %21 : vector<16x128xf32>
    %23 = arith.select %3, %20, %22 : vector<16x128xi1>, vector<16x128xf32>
    %24 = arith.mulf %18, %23 : vector<16x128xf32>
    %25 = vector.shape_cast %24 : vector<16x128xf32> to vector<1x16x128xf32>
    %cst_9 = arith.constant dense<0.000000e+00> : vector<1xf32>
    %26 = vector.multi_reduction <add>, %25, %cst_9 [1, 2] : vector<1x16x128xf32> to vector<1xf32>
    %27 = vector.shape_cast %26 : vector<1xf32> to vector<1x1x1xf32>
    %28 = vector.extract %27[0, 0, 0] : f32 from vector<1x1x1xf32>
    %cst_10 = arith.constant 0.000000e+00 : f32
    %29 = arith.subf %cst_10, %28 : f32
    %c0_11 = arith.constant 0 : index
    %c0_12 = arith.constant 0 : index
    %30 = memref.load %arg3[%c0_11, %c0_12] : memref<1x1xf32, #tpu.memory_space<smem>>
    memref.store %29, %arg3[%c0_11, %c0_12] : memref<1x1xf32, #tpu.memory_space<smem>>
    return
  }
  func.func @transform_0(%arg0: i32) -> (i32, i32) {
    %c0_i32 = arith.constant 0 : i32
    %c0_i32_0 = arith.constant 0 : i32
    return %arg0, %c0_i32 : i32, i32
  }
  func.func @transform_1(%arg0: i32) -> (i32, i32) {
    %c0_i32 = arith.constant 0 : i32
    %c0_i32_0 = arith.constant 0 : i32
    return %arg0, %c0_i32 : i32, i32
  }
  func.func @transform_2(%arg0: i32) -> (i32, i32) {
    %c0_i32 = arith.constant 0 : i32
    %c0_i32_0 = arith.constant 0 : i32
    return %arg0, %c0_i32 : i32, i32
  }
}

</mosaic_0001>

<llo_original>
// kernel: tpu_custom_call.1
$region0: #{tpu_custom_call.1}
  #allocation0 [shape = 'u32[]', space=smem, size = 0x4, offset = 0x4, fixed_abs, tag = 'smem constant byte address 0x4 - core index']
  #allocation1 [shape = 'u32[144,128]{1,0:T(1,128)}', space=vmem, size = 0x12000, scoped, tag = 'internal scratch']
  %s0 = inlined_call_operand.hbm [shape: f32[16,128], index: 0, kind: input, shape index: {}]
  %s1 = inlined_call_operand.hbm [shape: f32[16,128], index: 1, kind: input, shape index: {}]
  %s2 = inlined_call_operand.hbm [shape: f32[1,1], index: 2, kind: output, shape index: {}]
  %s3 = sld [smem:[#allocation0]]
  $region26: #{tpu_custom_call.1} parent=0
    _
  %s5 = ssub.s32 1, %s3
  %s6 = scalar_select 0, %s5, %s3
  $region1: #{tpu_custom_call.1} parent=0
    #allocation2 [shape = 'u8[8192]{0}', space=vmem, size = 0x2000, scoped, tag = 'input window, operand 0, single buffered']
    #allocation3 [shape = 's32[1]{0}', space=sflag, size = 0x4, scoped, tag = 'scoped memory for tpu_custom_call.1']
    #allocation4 [shape = 's32[1]{0}', space=sflag, size = 0x4, scoped, tag = 'scoped memory for tpu_custom_call.1']
    #allocation5 [shape = 'u8[8192]{0}', space=vmem, size = 0x2000, scoped, tag = 'input window, operand 1, single buffered']
    #allocation6 [shape = 's32[1]{0}', space=sflag, size = 0x4, scoped, tag = 'scoped memory for tpu_custom_call.1']
    #allocation7 [shape = 'u8[512]{0}', space=smem, size = 0x200, scoped, tag = 'output window, operand 0, single buffered']
    %7 = vsyncpa [#allocation3], 0
    %8 = vsyncpa [#allocation6], 0
    %9 = vsyncpa [#allocation4], 0
    // Predicated region
    $region2: #{tpu_custom_call.1} parent=1 // pred_check
      _
    $region3: #{tpu_custom_call.1} parent=1 // pred_check_branch
      %11 = sbr.rel (0) target = $region5
    $region4: #{tpu_custom_call.1} parent=1 // pred_region
      %s13 = ssub.s32 256, 256
      %14 = vsyncadd [#allocation3], %s13
      %s15 = sshll.u32 [#allocation2], 4
      %s16 = int_to_ptr.vmem [resolvable:$true] %s15
      %21 = dma.hbm_to_vmem [thread:$0]  %s0, 256, %s16, [#allocation3], 128, 128, 8
    $region5: #{tpu_custom_call.1} parent=1 // pred_fallthru
      _
    // Predicated region
    $region6: #{tpu_custom_call.1} parent=1 // pred_check
      _
    $region7: #{tpu_custom_call.1} parent=1 // pred_check_branch
      %23 = sbr.rel (0) target = $region9
    $region8: #{tpu_custom_call.1} parent=1 // pred_region
      %s25 = ssub.s32 256, 256
      %26 = vsyncadd [#allocation6], %s25
      %s27 = sshll.u32 [#allocation5], 4
      %s28 = int_to_ptr.vmem [resolvable:$true] %s27
      %33 = dma.hbm_to_vmem [thread:$0]  %s1, 256, %s28, [#allocation6], 128, 128, 8
    $region9: #{tpu_custom_call.1} parent=1 // pred_fallthru
      _
    // Predicated region
    $region10: #{tpu_custom_call.1} parent=1 // pred_check
      _
    $region11: #{tpu_custom_call.1} parent=1 // pred_check_branch
      %35 = sbr.rel (0) target = $region13
    $region12: #{tpu_custom_call.1} parent=1 // pred_region
      %36 = dma.done [#allocation3], 256
    $region13: #{tpu_custom_call.1} parent=1 // pred_fallthru
      _
    // Predicated region
    $region14: #{tpu_custom_call.1} parent=1 // pred_check
      _
    $region15: #{tpu_custom_call.1} parent=1 // pred_check_branch
      %38 = sbr.rel (0) target = $region17
    $region16: #{tpu_custom_call.1} parent=1 // pred_region
      %39 = dma.done [#allocation6], 256
    $region17: #{tpu_custom_call.1} parent=1 // pred_fallthru
      _
    %v40 = vld [vmem:[#allocation2] sm:$0xff]
    %v41 = vld [vmem:[#allocation2 + $0x8] sm:$0xff]
    %v42 = vld [vmem:[#allocation5] sm:$0xff]
    %v43 = vld [vmem:[#allocation5 + $0x8] sm:$0xff]
    %vm44 = vcmp.gt.f32.partialorder %v42, 0.5
    %vm45 = vcmp.gt.f32.partialorder %v43, 0.5
    %v46 = vxor.u32 %v40, 2147483648
    %v47 = vxor.u32 %v41, 2147483648
    %v48 = vmul.f32 %v46, 1.442695
    %v49 = vpow.pop %v48
    %v50 = vmul.f32 %v47, 1.442695
    %v51 = vpow.pop %v50
    %v52 = vadd.f32 %v49, 1.0
    %v53 = vadd.f32 %v51, 1.0
    %v54 = vrcp.pop %v52
    %v55 = vmul.f32 1.0, %v54
    %v56 = vrcp.pop %v53
    %v57 = vmul.f32 1.0, %v56
    %v58 = vsub.f32 1.0, %v55
    %v59 = vsub.f32 1.0, %v57
    %v60 = vadd.f32 %v58, 0.05
    %v61 = vadd.f32 %v59, 0.05
    %v62 = vmin.f32 %v60, 1.0
    %v63 = vmin.f32 %v61, 1.0
    %v64 = vsel %vm44, %v55, %v62
    %v65 = vsel %vm45, %v57, %v63
    %v66 = vmax.f32 %v64, 1e-08
    %v67 = vmax.f32 %v65, 1e-08
    %v68 = vlog2.pop %v66
    %v69 = vmul.f32 %v68, 0.6931472
    %v70 = vlog2.pop %v67
    %v71 = vmul.f32 %v70, 0.6931472
    %v72 = vsub.f32 1.0, %v64
    %v73 = vsub.f32 1.0, %v65
    %v74 = vmul.f32 %v72, %v72
    %v75 = vmul.f32 %v73, %v73
    %v76 = vmul.f32 %v74, %v74
    %v77 = vmul.f32 %v75, %v75
    %v78 = vsel %vm44, %v72, %v76
    %v79 = vsel %vm45, %v73, %v77
    %v80 = vmul.f32 %v69, %v78
    %v81 = vmul.f32 %v71, %v79
    %v82 = vadd.f32 %v80, %v81
    %83 = vadd.xlane.f32.xlu0 %v82
    %v84 = vpop.xlane.xlu0 %83
    %v85 = vrot.slane %v84, 4
    %v86 = vadd.f32 %v84, %v85
    %v87 = vrot.slane %v86, 2
    %v88 = vadd.f32 %v86, %v87
    %v89 = vrot.slane %v88, 1
    %v90 = vadd.f32 %v88, %v89
    %s91 = vtos %v90
    %s92 = ssub.f32 0.0, %s91
    %s93 = scalar_lea.smem [#allocation7], 0
    %94 = sst [smem:[%s93]] %s92
    // Predicated region
    $region18: #{tpu_custom_call.1} parent=1 // pred_check
      _
    $region19: #{tpu_custom_call.1} parent=1 // pred_check_branch
      %96 = sbr.rel (0) target = $region21
    $region20: #{tpu_custom_call.1} parent=1 // pred_region
      %s98 = ssub.s32 16, 16
      %99 = vsyncadd [#allocation4], %s98
      %102 = dma.smem_to_hbm [#allocation7], 16, %s2, [#allocation4]
    $region21: #{tpu_custom_call.1} parent=1 // pred_fallthru
      _
    // Predicated region
    $region22: #{tpu_custom_call.1} parent=1 // pred_check
      _
    $region23: #{tpu_custom_call.1} parent=1 // pred_check_branch
      %104 = sbr.rel (0) target = $region25
    $region24: #{tpu_custom_call.1} parent=1 // pred_region
      %105 = dma.done [#allocation4], 16
    $region25: #{tpu_custom_call.1} parent=1 // pred_fallthru
      _
    %106 = sfence
    %107 = vsyncpa [#allocation3], 1
    %108 = vsyncpa [#allocation6], 1
    %109 = vsyncpa [#allocation4], 1

</llo_original>
